<compile_context>
chip_gen: v7x
topology: tpu7x:2x2x1
jax: 0.10.0
libtpu: 0.0.40
codegen_flags: <defaults>
</compile_context>

<pallas_src>
import math
import functools

import jax
import jax.numpy as jnp
import numpy as np
from jax import lax
from jax.experimental import pallas as pl
from jax.experimental.pallas import tpu as pltpu


def _arcface_kernel(label_ref, emb_ref, w_ref, logits_ref, loss_ref,
                    m_sc, l_sc, tgt_sc,
                    *, s, cos_m, sin_m, th, mm, block_c):
    """One (B-tile, C-tile) grid step of ArcFace forward."""
    j = pl.program_id(1)
    nc = pl.num_programs(1)

    # ---- init per-B-tile online-LSE accumulators on the first C tile ----------
    @pl.when(j == 0)
    def _init():
        m_sc[...] = jnp.full_like(m_sc, -jnp.inf)
        l_sc[...] = jnp.zeros_like(l_sc)
        tgt_sc[...] = jnp.zeros_like(tgt_sc)

    # ---- l2 normalization in f32; MXU matmul on (bf16) operands, f32 accum ----
    emb = emb_ref[...].astype(jnp.float32)                    # (TB, D)
    w = w_ref[...].astype(jnp.float32)                        # (D, TC)
    emb_n = emb * lax.rsqrt(jnp.sum(emb * emb, axis=1, keepdims=True))
    w_n = w * lax.rsqrt(jnp.sum(w * w, axis=0, keepdims=True))
    cos_theta = jnp.dot(emb_n.astype(w_ref.dtype), w_n.astype(w_ref.dtype),
                        preferred_element_type=jnp.float32)
    cos_theta = jnp.clip(cos_theta, -1.0, 1.0)                # matches torch .clamp(-1, 1)

    tb, tc = cos_theta.shape
    labels = label_ref[...]                                   # (TB, 1) int32
    col0 = j * block_c
    col_ids = col0 + lax.broadcasted_iota(jnp.int32, (tb, tc), 1)
    onehot = col_ids == labels                                # (TB, TC) bool
    in_tile = (labels >= col0) & (labels < col0 + block_c)    # (TB, 1)  bool

    # ---- additive angular margin on the target cosine --------------------------
    target_logit = jnp.sum(jnp.where(onehot, cos_theta, 0.0), axis=1, keepdims=True)
    sin_theta = jnp.sqrt(jnp.maximum(1.0 - target_logit * target_logit, 0.0))
    cos_theta_m = target_logit * cos_m - sin_theta * sin_m
    final_target_logit = jnp.where(target_logit > th, cos_theta_m, target_logit - mm)

    # single select/scatter pass, single scale
    output = jnp.where(onehot, final_target_logit, cos_theta) * s    # (TB, TC) f32
    logits_ref[...] = output.astype(logits_ref.dtype)

    # ---- online logsumexp across C tiles ---------------------------------------
    tile_max = jnp.max(output, axis=1, keepdims=True)
    m_new = jnp.maximum(m_sc[...], tile_max)
    l_sc[...] = l_sc[...] * jnp.exp(m_sc[...] - m_new) + jnp.sum(
        jnp.exp(output - m_new), axis=1, keepdims=True)
    m_sc[...] = m_new
    # CE target term == s * final_target_logit (no extra masked (TB,TC) reduce)
    tgt_sc[...] = tgt_sc[...] + jnp.where(in_tile, s * final_target_logit, 0.0)

    @pl.when(j == nc - 1)
    def _finalize():
        loss_ref[...] = (m_sc[...] + jnp.log(l_sc[...])) - tgt_sc[...]


def _pick_block(dim, candidates):
    for c in candidates:
        if dim % c == 0:
            return c
    return dim  # full extent is always a legal block size


def arcface_forward(embeddings, kernel, label, *, s=64.0, m=0.5,
                    block_b=None, block_c=None, use_bf16_matmul=True,
                    logits_dtype=jnp.float32):
    """Returns (scaled margin logits (B, C), scalar mean-CE loss)."""
    B, D = embeddings.shape
    D2, C = kernel.shape
    assert D == D2
    compute_dtype = jnp.bfloat16 if use_bf16_matmul else jnp.float32
    w_bytes = jnp.dtype(compute_dtype).itemsize
    l_bytes = jnp.dtype(logits_dtype).itemsize

    tb = block_b if block_b is not None else _pick_block(B, (128, 64, 32, 16, 8))
    if block_c is not None:
        tc = block_c
    else:
        # keep double-buffered (weight tile + logits tile + f32 staging) well under
        # the 32 MiB scoped VMEM limit (v7x has only 64 MiB physical).
        budget = 8 * 1024 * 1024
        cand = [c for c in (4096, 2048, 1024, 512, 256, 128)
                if (D * c * w_bytes + tb * c * (l_bytes + 4)) <= budget]
        tc = _pick_block(C, tuple(cand) if cand else (128,))
    if B % tb or C % tc:
        raise ValueError("block sizes must divide (B, C)")
    if (tb % 8 and tb != B) or (tc % 128 and tc != C):
        raise ValueError("blocks must be (8,128)-aligned or full extent")

    cos_m = math.cos(m)
    sin_m = math.sin(m)
    th = math.cos(math.pi - m)
    mm = math.sin(math.pi - m) * m

    label2d = label.astype(jnp.int32).reshape(B, 1)
    emb = embeddings.astype(jnp.float32)
    w = kernel.astype(compute_dtype)   # bf16 weight stream halves the dominant HBM traffic

    kern = functools.partial(_arcface_kernel, s=float(s), cos_m=cos_m, sin_m=sin_m,
                             th=th, mm=mm, block_c=tc)

    grid_spec = pltpu.PrefetchScalarGridSpec(
        num_scalar_prefetch=0,
        grid=(B // tb, C // tc),
        in_specs=[
            pl.BlockSpec((tb, 1), lambda i, j: (i, 0)),    # labels
            pl.BlockSpec((tb, D), lambda i, j: (i, 0)),    # embeddings (D untiled)
            pl.BlockSpec((D, tc), lambda i, j: (0, j)),    # weight tile
        ],
        out_specs=(
            pl.BlockSpec((tb, tc), lambda i, j: (i, j)),   # logits (lane-dense)
            pl.BlockSpec((tb, 1), lambda i, j: (i, 0)),    # per-row loss (written at last C tile)
        ),
        scratch_shapes=[
            pltpu.VMEM((tb, 1), jnp.float32),   # running max
            pltpu.VMEM((tb, 1), jnp.float32),   # running sum(exp)
            pltpu.VMEM((tb, 1), jnp.float32),   # target logit term
        ],
    )

    logits, per_row_loss = pl.pallas_call(
        kern,
        out_shape=(jax.ShapeDtypeStruct((B, C), logits_dtype),
                   jax.ShapeDtypeStruct((B, 1), jnp.float32)),
        grid_spec=grid_spec,
        compiler_params=pltpu.CompilerParams(
            dimension_semantics=("parallel", "arbitrary"),
            vmem_limit_bytes=32 * 1024 * 1024,
        ),
    )(label2d, emb, w)

    # TODO(synk): SoftmaxLossMixin._calc_loss source not provided; standard
    # softmax cross-entropy with mean reduction is used.
    loss = jnp.mean(per_row_loss)
    return logits, loss


def _reference(embeddings, kernel, label, *, s, m, compute_dtype=jnp.bfloat16):
    """Pure-JAX reference mirroring the kernel's bf16 MXU operands."""
    cos_m, sin_m = math.cos(m), math.sin(m)
    th = math.cos(math.pi - m)
    mm = math.sin(math.pi - m) * m
    emb = embeddings.astype(jnp.float32)
    w = kernel.astype(compute_dtype).astype(jnp.float32)  # mirror bf16 weight stream
    emb_n = emb / jnp.linalg.norm(emb, axis=1, keepdims=True)
    w_n = w / jnp.linalg.norm(w, axis=0, keepdims=True)
    cos_theta = jnp.clip(
        jnp.dot(emb_n.astype(compute_dtype), w_n.astype(compute_dtype),
                preferred_element_type=jnp.float32), -1.0, 1.0)
    tgt = jnp.take_along_axis(cos_theta, label[:, None].astype(jnp.int32), axis=1)
    sin_t = jnp.sqrt(jnp.maximum(1.0 - tgt * tgt, 0.0))
    cos_tm = tgt * cos_m - sin_t * sin_m
    final = jnp.where(tgt > th, cos_tm, tgt - mm)
    onehot = jax.nn.one_hot(label, cos_theta.shape[1], dtype=jnp.bool_)
    out = jnp.where(onehot, final, cos_theta) * s
    row_max = jnp.max(out, axis=1, keepdims=True)
    lse = row_max + jnp.log(jnp.sum(jnp.exp(out - row_max), axis=1, keepdims=True))
    loss = jnp.mean(lse - s * final)
    return out, loss


if __name__ == "__main__":
    B = 32
    in_features = 32
    out_features = 512

    key = jax.random.PRNGKey(0)
    k_emb, k_w, k_lbl = jax.random.split(key, 3)

    embeddings = jax.random.normal(k_emb, (B, in_features), dtype=jnp.float32)
    # torch.nn.init.normal_(self.kernel, std=0.01)
    weight = 0.01 * jax.random.normal(k_w, (in_features, out_features), dtype=jnp.float32)
    label = jax.random.randint(k_lbl, (B,), 0, out_features, dtype=jnp.int32)

    # block_b/block_c chosen so the grid is (2, 2) even at these small demo shapes.
    logits, loss = arcface_forward(embeddings, weight, label, s=64.0, m=0.5,
                                   block_b=16, block_c=256)
    jax.block_until_ready((logits, loss))

    ref_logits, ref_loss = _reference(embeddings, weight, label, s=64.0, m=0.5,
                                      compute_dtype=jnp.bfloat16)
    jax.block_until_ready((ref_logits, ref_loss))

    assert logits.shape == (B, out_features)
    assert bool(jnp.isfinite(loss))
    np.testing.assert_allclose(np.asarray(logits), np.asarray(ref_logits),
                               rtol=5e-2, atol=1e-1)
    np.testing.assert_allclose(float(loss), float(ref_loss), rtol=2e-2, atol=1e-1)
    print("KERNEL_OK")
</pallas_src>

<mosaic_0001>
module attributes {stable_mosaic.version = 11 : i64} {
  func.func @_arcface_kernel(%arg0: i32, %arg1: i32, %arg2: memref<16x1xi32, #tpu.memory_space<vmem>>, %arg3: memref<16x32xf32, #tpu.memory_space<vmem>>, %arg4: memref<32x256xbf16, #tpu.memory_space<vmem>>, %arg5: memref<16x256xf32, #tpu.memory_space<vmem>>, %arg6: memref<16x1xf32, #tpu.memory_space<vmem>>, %arg7: memref<16x1xf32, #tpu.memory_space<vmem>>, %arg8: memref<16x1xf32, #tpu.memory_space<vmem>>, %arg9: memref<16x1xf32, #tpu.memory_space<vmem>>) attributes {dimension_semantics = [#tpu.dimension_semantics<parallel>, #tpu.dimension_semantics<arbitrary>], iteration_bounds = array<i64: 2, 2>, scalar_prefetch = 0 : i64, scratch_operands = 3 : i64, tpu.core_type = #tpu.core_type<tc>, window_params = [{transform_indices = @transform_0, window_bounds = array<i64: 16, 1>}, {transform_indices = @transform_1, window_bounds = array<i64: 16, 32>}, {transform_indices = @transform_2, window_bounds = array<i64: 32, 256>}, {transform_indices = @transform_3, window_bounds = array<i64: 16, 256>}, {transform_indices = @transform_4, window_bounds = array<i64: 16, 1>}]} {
    %c0_i32 = arith.constant 0 : i32
    %0 = arith.cmpi eq, %arg1, %c0_i32 : i32
    %1 = arith.extui %0 : i1 to i32
    %c0_i32_0 = arith.constant 0 : i32
    %2 = arith.cmpi ne, %1, %c0_i32_0 : i32
    scf.if %2 {
      %cst_41 = arith.constant 0xFF800000 : f32
      %91 = vector.broadcast %cst_41 : f32 to vector<16x1xf32>
      %c0_42 = arith.constant 0 : index
      %c0_43 = arith.constant 0 : index
      %92 = vector.load %arg7[%c0_42, %c0_43] : memref<16x1xf32, #tpu.memory_space<vmem>>, vector<16x1xf32>
      tpu.vector_store %arg7[%c0_42, %c0_43], %91 {strides = array<i32>} : memref<16x1xf32, #tpu.memory_space<vmem>>, vector<16x1xf32>,
      %cst_44 = arith.constant 0.000000e+00 : f32
      %93 = vector.broadcast %cst_44 : f32 to vector<16x1xf32>
      %c0_45 = arith.constant 0 : index
      %c0_46 = arith.constant 0 : index
      %94 = vector.load %arg8[%c0_45, %c0_46] : memref<16x1xf32, #tpu.memory_space<vmem>>, vector<16x1xf32>
      tpu.vector_store %arg8[%c0_45, %c0_46], %93 {strides = array<i32>} : memref<16x1xf32, #tpu.memory_space<vmem>>, vector<16x1xf32>,
      %cst_47 = arith.constant 0.000000e+00 : f32
      %95 = vector.broadcast %cst_47 : f32 to vector<16x1xf32>
      %c0_48 = arith.constant 0 : index
      %c0_49 = arith.constant 0 : index
      %96 = vector.load %arg9[%c0_48, %c0_49] : memref<16x1xf32, #tpu.memory_space<vmem>>, vector<16x1xf32>
      tpu.vector_store %arg9[%c0_48, %c0_49], %95 {strides = array<i32>} : memref<16x1xf32, #tpu.memory_space<vmem>>, vector<16x1xf32>,
    } else {
    }
    %c0 = arith.constant 0 : index
    %c0_1 = arith.constant 0 : index
    %3 = vector.load %arg3[%c0, %c0_1] : memref<16x32xf32, #tpu.memory_space<vmem>>, vector<16x32xf32>
    %c0_2 = arith.constant 0 : index
    %c0_3 = arith.constant 0 : index
    %4 = vector.load %arg4[%c0_2, %c0_3] : memref<32x256xbf16, #tpu.memory_space<vmem>>, vector<32x256xbf16>
    %5 = arith.extf %4 : vector<32x256xbf16> to vector<32x256xf32>
    %6 = arith.mulf %3, %3 : vector<16x32xf32>
    %cst = arith.constant dense<0.000000e+00> : vector<16xf32>
    %7 = vector.multi_reduction <add>, %6, %cst [1] : vector<16x32xf32> to vector<16xf32>
    %8 = vector.shape_cast %7 : vector<16xf32> to vector<16x1xf32>
    %9 = math.rsqrt %8 : vector<16x1xf32>
    %10 = vector.broadcast %9 : vector<16x1xf32> to vector<16x32xf32>
    %11 = arith.mulf %3, %10 : vector<16x32xf32>
    %12 = arith.mulf %5, %5 : vector<32x256xf32>
    %cst_4 = arith.constant dense<0.000000e+00> : vector<256xf32>
    %13 = vector.multi_reduction <add>, %12, %cst_4 [0] : vector<32x256xf32> to vector<256xf32>
    %14 = vector.shape_cast %13 : vector<256xf32> to vector<1x256xf32>
    %15 = math.rsqrt %14 : vector<1x256xf32>
    %16 = vector.broadcast %15 : vector<1x256xf32> to vector<32x256xf32>
    %17 = arith.mulf %5, %16 : vector<32x256xf32>
    %18 = arith.truncf %11 : vector<16x32xf32> to vector<16x32xbf16>
    %19 = arith.truncf %17 : vector<32x256xf32> to vector<32x256xbf16>
    %cst_5 = arith.constant dense<0.000000e+00> : vector<16x256xf32>
    %20 = tpu.matmul %18, %19, %cst_5 {dimension_numbers = #tpu.dot_dimension_numbers<[1], [0], [0], [1], [0, 0, 1, 1], [], []>} : vector<16x32xbf16>, vector<32x256xbf16>, vector<16x256xf32> -> vector<16x256xf32>
    %cst_6 = arith.constant -1.000000e+00 : f32
    %cst_7 = arith.constant 1.000000e+00 : f32
    %21 = vector.broadcast %cst_6 : f32 to vector<16x256xf32>
    %22 = arith.maximumf %21, %20 : vector<16x256xf32>
    %23 = vector.broadcast %cst_7 : f32 to vector<16x256xf32>
    %24 = arith.minimumf %23, %22 : vector<16x256xf32>
    %c0_8 = arith.constant 0 : index
    %c0_9 = arith.constant 0 : index
    %25 = vector.load %arg2[%c0_8, %c0_9] : memref<16x1xi32, #tpu.memory_space<vmem>>, vector<16x1xi32>
    %c256_i32 = arith.constant 256 : i32
    %26 = arith.muli %arg1, %c256_i32 : i32
    %27 = tpu.iota {dimensions = array<i32: 1>} : vector<16x256xi32>
    %28 = vector.broadcast %26 : i32 to vector<16x256xi32>
    %29 = arith.addi %28, %27 : vector<16x256xi32>
    %30 = vector.broadcast %25 : vector<16x1xi32> to vector<16x256xi32>
    %31 = arith.cmpi eq, %29, %30 : vector<16x256xi32>
    %32 = vector.broadcast %26 : i32 to vector<16x1xi32>
    %33 = arith.cmpi sge, %25, %32 : vector<16x1xi32>
    %c256_i32_10 = arith.constant 256 : i32
    %34 = arith.addi %26, %c256_i32_10 : i32
    %35 = vector.broadcast %34 : i32 to vector<16x1xi32>
    %36 = arith.cmpi slt, %25, %35 : vector<16x1xi32>
    %37 = arith.andi %33, %36 : vector<16x1xi1>
    %cst_11 = arith.constant 0.000000e+00 : f32
    %38 = vector.broadcast %cst_11 : f32 to vector<16x256xf32>
    %39 = arith.select %31, %24, %38 : vector<16x256xi1>, vector<16x256xf32>
    %cst_12 = arith.constant dense<0.000000e+00> : vector<16xf32>
    %40 = vector.multi_reduction <add>, %39, %cst_12 [1] : vector<16x256xf32> to vector<16xf32>
    %41 = vector.shape_cast %40 : vector<16xf32> to vector<16x1xf32>
    %42 = arith.mulf %41, %41 : vector<16x1xf32>
    %cst_13 = arith.constant 1.000000e+00 : f32
    %43 = vector.broadcast %cst_13 : f32 to vector<16x1xf32>
    %44 = arith.subf %43, %42 : vector<16x1xf32>
    %cst_14 = arith.constant 0.000000e+00 : f32
    %45 = vector.broadcast %cst_14 : f32 to vector<16x1xf32>
    %46 = arith.maximumf %44, %45 : vector<16x1xf32>
    %47 = math.sqrt %46 : vector<16x1xf32>
    %cst_15 = arith.constant 0.87758255 : f32
    %48 = vector.broadcast %cst_15 : f32 to vector<16x1xf32>
    %49 = arith.mulf %41, %48 : vector<16x1xf32>
    %cst_16 = arith.constant 0.47942555 : f32
    %50 = vector.broadcast %cst_16 : f32 to vector<16x1xf32>
    %51 = arith.mulf %47, %50 : vector<16x1xf32>
    %52 = arith.subf %49, %51 : vector<16x1xf32>
    %cst_17 = arith.constant -0.87758255 : f32
    %53 = vector.broadcast %cst_17 : f32 to vector<16x1xf32>
    %54 = arith.cmpf ogt, %41, %53 : vector<16x1xf32>
    %cst_18 = arith.constant 0.239712775 : f32
    %55 = vector.broadcast %cst_18 : f32 to vector<16x1xf32>
    %56 = arith.subf %41, %55 : vector<16x1xf32>
    %57 = arith.select %54, %52, %56 : vector<16x1xi1>, vector<16x1xf32>
    %58 = vector.shape_cast %57 : vector<16x1xf32> to vector<16x1xf32>
    %59 = vector.broadcast %58 : vector<16x1xf32> to vector<16x256xf32>
    %60 = arith.select %31, %59, %24 : vector<16x256xi1>, vector<16x256xf32>
    %cst_19 = arith.constant 6.400000e+01 : f32
    %61 = vector.broadcast %cst_19 : f32 to vector<16x256xf32>
    %62 = arith.mulf %60, %61 : vector<16x256xf32>
    %c0_20 = arith.constant 0 : index
    %c0_21 = arith.constant 0 : index
    %63 = vector.load %arg5[%c0_20, %c0_21] : memref<16x256xf32, #tpu.memory_space<vmem>>, vector<16x256xf32>
    tpu.vector_store %arg5[%c0_20, %c0_21], %62 {strides = array<i32>} : memref<16x256xf32, #tpu.memory_space<vmem>>, vector<16x256xf32>,
    %cst_22 = arith.constant dense<0xFF800000> : vector<16xf32>
    %64 = vector.multi_reduction <maximumf>, %62, %cst_22 [1] : vector<16x256xf32> to vector<16xf32>
    %65 = vector.shape_cast %64 : vector<16xf32> to vector<16x1xf32>
    %c0_23 = arith.constant 0 : index
    %c0_24 = arith.constant 0 : index
    %66 = vector.load %arg7[%c0_23, %c0_24] : memref<16x1xf32, #tpu.memory_space<vmem>>, vector<16x1xf32>
    %67 = arith.maximumf %66, %65 : vector<16x1xf32>
    %c0_25 = arith.constant 0 : index
    %c0_26 = arith.constant 0 : index
    %68 = vector.load %arg8[%c0_25, %c0_26] : memref<16x1xf32, #tpu.memory_space<vmem>>, vector<16x1xf32>
    %c0_27 = arith.constant 0 : index
    %c0_28 = arith.constant 0 : index
    %69 = vector.load %arg7[%c0_27, %c0_28] : memref<16x1xf32, #tpu.memory_space<vmem>>, vector<16x1xf32>
    %70 = arith.subf %69, %67 : vector<16x1xf32>
    %71 = math.exp %70 : vector<16x1xf32>
    %72 = arith.mulf %68, %71 : vector<16x1xf32>
    %73 = vector.broadcast %67 : vector<16x1xf32> to vector<16x256xf32>
    %74 = arith.subf %62, %73 : vector<16x256xf32>
    %75 = math.exp %74 : vector<16x256xf32>
    %cst_29 = arith.constant dense<0.000000e+00> : vector<16xf32>
    %76 = vector.multi_reduction <add>, %75, %cst_29 [1] : vector<16x256xf32> to vector<16xf32>
    %77 = vector.shape_cast %76 : vector<16xf32> to vector<16x1xf32>
    %78 = arith.addf %72, %77 : vector<16x1xf32>
    %c0_30 = arith.constant 0 : index
    %c0_31 = arith.constant 0 : index
    %79 = vector.load %arg8[%c0_30, %c0_31] : memref<16x1xf32, #tpu.memory_space<vmem>>, vector<16x1xf32>
    tpu.vector_store %arg8[%c0_30, %c0_31], %78 {strides = array<i32>} : memref<16x1xf32, #tpu.memory_space<vmem>>, vector<16x1xf32>,
    %c0_32 = arith.constant 0 : index
    %c0_33 = arith.constant 0 : index
    %80 = vector.load %arg7[%c0_32, %c0_33] : memref<16x1xf32, #tpu.memory_space<vmem>>, vector<16x1xf32>
    tpu.vector_store %arg7[%c0_32, %c0_33], %67 {strides = array<i32>} : memref<16x1xf32, #tpu.memory_space<vmem>>, vector<16x1xf32>,
    %c0_34 = arith.constant 0 : index
    %c0_35 = arith.constant 0 : index
    %81 = vector.load %arg9[%c0_34, %c0_35] : memref<16x1xf32, #tpu.memory_space<vmem>>, vector<16x1xf32>
    %cst_36 = arith.constant 6.400000e+01 : f32
    %82 = vector.broadcast %cst_36 : f32 to vector<16x1xf32>
    %83 = arith.mulf %82, %57 : vector<16x1xf32>
    %cst_37 = arith.constant 0.000000e+00 : f32
    %84 = vector.broadcast %cst_37 : f32 to vector<16x1xf32>
    %85 = arith.select %37, %83, %84 : vector<16x1xi1>, vector<16x1xf32>
    %86 = arith.addf %81, %85 : vector<16x1xf32>
    %c0_38 = arith.constant 0 : index
    %c0_39 = arith.constant 0 : index
    %87 = vector.load %arg9[%c0_38, %c0_39] : memref<16x1xf32, #tpu.memory_space<vmem>>, vector<16x1xf32>
    tpu.vector_store %arg9[%c0_38, %c0_39], %86 {strides = array<i32>} : memref<16x1xf32, #tpu.memory_space<vmem>>, vector<16x1xf32>,
    %c1_i32 = arith.constant 1 : i32
    %88 = arith.cmpi eq, %arg1, %c1_i32 : i32
    %89 = arith.extui %88 : i1 to i32
    %c0_i32_40 = arith.constant 0 : i32
    %90 = arith.cmpi ne, %89, %c0_i32_40 : i32
    scf.if %90 {
      %c0_41 = arith.constant 0 : index
      %c0_42 = arith.constant 0 : index
      %91 = vector.load %arg7[%c0_41, %c0_42] : memref<16x1xf32, #tpu.memory_space<vmem>>, vector<16x1xf32>
      %c0_43 = arith.constant 0 : index
      %c0_44 = arith.constant 0 : index
      %92 = vector.load %arg8[%c0_43, %c0_44] : memref<16x1xf32, #tpu.memory_space<vmem>>, vector<16x1xf32>
      %93 = math.log %92 : vector<16x1xf32>
      %94 = arith.addf %91, %93 : vector<16x1xf32>
      %c0_45 = arith.constant 0 : index
      %c0_46 = arith.constant 0 : index
      %95 = vector.load %arg9[%c0_45, %c0_46] : memref<16x1xf32, #tpu.memory_space<vmem>>, vector<16x1xf32>
      %96 = arith.subf %94, %95 : vector<16x1xf32>
      %c0_47 = arith.constant 0 : index
      %c0_48 = arith.constant 0 : index
      %97 = vector.load %arg6[%c0_47, %c0_48] : memref<16x1xf32, #tpu.memory_space<vmem>>, vector<16x1xf32>
      tpu.vector_store %arg6[%c0_47, %c0_48], %96 {strides = array<i32>} : memref<16x1xf32, #tpu.memory_space<vmem>>, vector<16x1xf32>,
    } else {
    }
    return
  }
  func.func @transform_0(%arg0: i32, %arg1: i32) -> (i32, i32) {
    %c0_i32 = arith.constant 0 : i32
    %c0_i32_0 = arith.constant 0 : i32
    return %arg0, %c0_i32 : i32, i32
  }
  func.func @transform_1(%arg0: i32, %arg1: i32) -> (i32, i32) {
    %c0_i32 = arith.constant 0 : i32
    %c0_i32_0 = arith.constant 0 : i32
    return %arg0, %c0_i32 : i32, i32
  }
  func.func @transform_2(%arg0: i32, %arg1: i32) -> (i32, i32) {
    %c0_i32 = arith.constant 0 : i32
    %c0_i32_0 = arith.constant 0 : i32
    return %c0_i32, %arg1 : i32, i32
  }
  func.func @transform_3(%arg0: i32, %arg1: i32) -> (i32, i32) {
    %c0_i32 = arith.constant 0 : i32
    return %arg0, %arg1 : i32, i32
  }
  func.func @transform_4(%arg0: i32, %arg1: i32) -> (i32, i32) {
    %c0_i32 = arith.constant 0 : i32
    %c0_i32_0 = arith.constant 0 : i32
    return %arg0, %c0_i32 : i32, i32
  }
}

</mosaic_0001>

<llo_original>
// kernel: tpu_custom_call.1
$region0: #{tpu_custom_call.1}
  #allocation0 [shape = 'u32[]', space=smem, size = 0x4, offset = 0x4, fixed_abs, tag = 'smem constant byte address 0x4 - core index']
  #allocation1 [shape = 'u32[144,128]{1,0:T(1,128)}', space=vmem, size = 0x12000, scoped, tag = 'internal scratch']
  #allocation2 [shape = 'f32[16,1]{1,0:T(8,128)}', space=vmem, size = 0x2000, scoped, tag = 'scratch operand']
  #allocation3 [shape = 'f32[16,1]{1,0:T(8,128)}', space=vmem, size = 0x2000, scoped, tag = 'scratch operand']
  #allocation4 [shape = 'f32[16,1]{1,0:T(8,128)}', space=vmem, size = 0x2000, scoped, tag = 'scratch operand']
  %s0 = inlined_call_operand.vmem [shape: s32[32,1], index: 0, kind: input, shape index: {}]
  %s1 = inlined_call_operand.vmem [shape: f32[32,32], index: 1, kind: input, shape index: {}]
  %s2 = inlined_call_operand.hbm [shape: bf16[32,512], index: 2, kind: input, shape index: {}]
  %s3 = inlined_call_operand.hbm [shape: f32[32,512], index: 3, kind: output, shape index: {0}]
  %s4 = inlined_call_operand.vmem [shape: f32[32,1], index: 4, kind: output, shape index: {1}]
  %5 = xla_tuple %s3, %s4
  %s6 = sld [smem:[#allocation0]]
  $region65: #{tpu_custom_call.1} parent=0
    _
  %s8 = ssub.s32 1, %s6
  %s9 = scalar_select 0, %s8, %s6
  $region1: #{tpu_custom_call.1} parent=0
    #allocation5 [shape = 'u8[32768]{0}', space=vmem, size = 0x8000, scoped, tag = 'input window, operand 2']
    #allocation6 [shape = 's32[2]{0}', space=sflag, size = 0x8, scoped, tag = 'scoped memory for tpu_custom_call.1']
    #allocation7 [shape = 's32[2]{0}', space=sflag, size = 0x8, scoped, tag = 'scoped memory for tpu_custom_call.1']
    #allocation8 [shape = 'u8[32768]{0}', space=vmem, size = 0x8000, scoped, tag = 'output window, operand 0']
    %10 = vsyncpa [#allocation6], 0
    %s11 = scalar_lea.sflag [#allocation6], 1
    %12 = vsyncpa %s11, 0
    %13 = vsyncpa [#allocation7], 0
    %s14 = scalar_lea.sflag [#allocation7], 1
    %15 = vsyncpa %s14, 0
    loop: start=0, step=1, limit=6
    $region2: #{tpu_custom_call.1} parent=1 // loop_pre_header
      _
    $region3: #{tpu_custom_call.1} parent=1 // loop_header
      %s17 = sphi 0, %s21
      %p18 = scmp.ge.s32.totalorder %s17, 6
      %s24 = sphi 0, %s36
      %s25 = sphi 0, %s32
      %s26 = sphi 0, %s24
      %s27 = sphi 0, %s25
      %s28 = sphi 0, %s26
      %s29 = sphi 0, %s27
      %s39 = sphi 0, %s41
      %s42 = sphi 0, %s39
      %s43 = sphi 0, %s42
      %s59 = sphi 0, %s43
      %s65 = sphi 0, %s67
      %s68 = sphi 0, %s65
      %s69 = sphi 0, %s68
      %s85 = sphi 0, %s69
      %s91 = sphi 0, %s93
      %s94 = sphi 0, %s91
      %s95 = sphi 0, %s94
      %s111 = sphi 0, %s95
      %s119 = sphi 0, %s121
      %s122 = sphi 0, %s119
      %s123 = sphi 0, %s122
      %s139 = sphi 0, %s123
      %s145 = sphi 0, %s147
      %s148 = sphi 0, %s145
      %s149 = sphi 0, %s148
      %s165 = sphi 0, %s149
    $region4: #{tpu_custom_call.1} parent=1 // loop_header_branch
      %20 = sbr.rel (%p18) target = $region8
    $region5: #{tpu_custom_call.1} parent=1 // loop_body
      %s22 = ssub.s32 %s17, 1
      %s23 = ssub.s32 %s17, 2
      %s30 = sadd.s32 1, %s25
      %p31 = scmp.ge.s32.totalorder %s30, 2
      %s32 = scalar_select %p31, 0, %s30
      %s33 = sadd.s32 1, %s24
      %s34 = scalar_select %p31, %s33, %s24
      %p35 = scmp.ge.s32.totalorder %s34, 2
      %s36 = scalar_select %p35, 0, %s34
      %s37 = ssub.s32 %s24, %s36
      %p38 = scmp.eq.s32.totalorder %s37, 0
      %s40 = sadd.s32 %s39, 1
      %s41 = scalar_select %p38, %s39, %s40
      %p44 = pneg %p38
      %p45 = scmp.eq.s32.totalorder %s17, 3
      %p46 = por %p44, %p45
      %p47 = scmp.ne.s32.totalorder %s39, %s42
      %p48 = scmp.eq.s32.totalorder %s17, 0
      %p49 = por %p47, %p48
      %p50 = scmp.ne.s32.totalorder %s39, %s42
      %p51 = scmp.eq.s32.totalorder %s22, 3
      %p52 = por %p50, %p51
      %p53 = scmp.ne.s32.totalorder %s42, %s43
      %p54 = scmp.eq.s32.totalorder %s22, 0
      %p55 = por %p53, %p54
      %p56 = scmp.ne.s32.totalorder %s42, %s43
      %p57 = scmp.eq.s32.totalorder %s23, 3
      %p58 = por %p56, %p57
      %p60 = scmp.ne.s32.totalorder %s43, %s59
      %p61 = scmp.eq.s32.totalorder %s23, 0
      %p62 = por %p60, %p61
      %s63 = ssub.s32 %s24, %s36
      %p64 = scmp.eq.s32.totalorder %s63, 0
      %s66 = sadd.s32 %s65, 1
      %s67 = scalar_select %p64, %s65, %s66
      %p70 = pneg %p64
      %p71 = scmp.eq.s32.totalorder %s17, 3
      %p72 = por %p70, %p71
      %p73 = scmp.ne.s32.totalorder %s65, %s68
      %p74 = scmp.eq.s32.totalorder %s17, 0
      %p75 = por %p73, %p74
      %p76 = scmp.ne.s32.totalorder %s65, %s68
      %p77 = scmp.eq.s32.totalorder %s22, 3
      %p78 = por %p76, %p77
      %p79 = scmp.ne.s32.totalorder %s68, %s69
      %p80 = scmp.eq.s32.totalorder %s22, 0
      %p81 = por %p79, %p80
      %p82 = scmp.ne.s32.totalorder %s68, %s69
      %p83 = scmp.eq.s32.totalorder %s23, 3
      %p84 = por %p82, %p83
      %p86 = scmp.ne.s32.totalorder %s69, %s85
      %p87 = scmp.eq.s32.totalorder %s23, 0
      %p88 = por %p86, %p87
      %s89 = ssub.s32 %s25, %s32
      %p90 = scmp.eq.s32.totalorder %s89, 0
      %s92 = sadd.s32 %s91, 1
      %s93 = scalar_select %p90, %s91, %s92
      %p96 = pneg %p90
      %p97 = scmp.eq.s32.totalorder %s17, 3
      %p98 = por %p96, %p97
      %p99 = scmp.ne.s32.totalorder %s91, %s94
      %p100 = scmp.eq.s32.totalorder %s17, 0
      %p101 = por %p99, %p100
      %p102 = scmp.ne.s32.totalorder %s91, %s94
      %p103 = scmp.eq.s32.totalorder %s22, 3
      %p104 = por %p102, %p103
      %p105 = scmp.ne.s32.totalorder %s94, %s95
      %p106 = scmp.eq.s32.totalorder %s22, 0
      %p107 = por %p105, %p106
      %p108 = scmp.ne.s32.totalorder %s94, %s95
      %p109 = scmp.eq.s32.totalorder %s23, 3
      %p110 = por %p108, %p109
      %p112 = scmp.ne.s32.totalorder %s95, %s111
      %p113 = scmp.eq.s32.totalorder %s23, 0
      %p114 = por %p112, %p113
      %s115 = ssub.s32 %s24, %s36
      %s116 = ssub.s32 %s25, %s32
      %s117 = sor.u32 %s115, %s116
      %p118 = scmp.eq.s32.totalorder %s117, 0
      %s120 = sadd.s32 %s119, 1
      %s121 = scalar_select %p118, %s119, %s120
      %p124 = pneg %p118
      %p125 = scmp.eq.s32.totalorder %s17, 3
      %p126 = por %p124, %p125
      %p127 = scmp.ne.s32.totalorder %s119, %s122
      %p128 = scmp.eq.s32.totalorder %s17, 0
      %p129 = por %p127, %p128
      %p130 = scmp.ne.s32.totalorder %s119, %s122
      %p131 = scmp.eq.s32.totalorder %s22, 3
      %p132 = por %p130, %p131
      %p133 = scmp.ne.s32.totalorder %s122, %s123
      %p134 = scmp.eq.s32.totalorder %s22, 0
      %p135 = por %p133, %p134
      %p136 = scmp.ne.s32.totalorder %s122, %s123
      %p137 = scmp.eq.s32.totalorder %s23, 3
      %p138 = por %p136, %p137
      %p140 = scmp.ne.s32.totalorder %s123, %s139
      %p141 = scmp.eq.s32.totalorder %s23, 0
      %p142 = por %p140, %p141
      %s143 = ssub.s32 %s24, %s36
      %p144 = scmp.eq.s32.totalorder %s143, 0
      %s146 = sadd.s32 %s145, 1
      %s147 = scalar_select %p144, %s145, %s146
      %p150 = pneg %p144
      %p151 = scmp.eq.s32.totalorder %s17, 3
      %p152 = por %p150, %p151
      %p153 = scmp.ne.s32.totalorder %s145, %s148
      %p154 = scmp.eq.s32.totalorder %s17, 0
      %p155 = por %p153, %p154
      %p156 = scmp.ne.s32.totalorder %s145, %s148
      %p157 = scmp.eq.s32.totalorder %s22, 3
      %p158 = por %p156, %p157
      %p159 = scmp.ne.s32.totalorder %s148, %s149
      %p160 = scmp.eq.s32.totalorder %s22, 0
      %p161 = por %p159, %p160
      %p162 = scmp.ne.s32.totalorder %s148, %s149
      %p163 = scmp.eq.s32.totalorder %s23, 3
      %p164 = por %p162, %p163
      %p166 = scmp.ne.s32.totalorder %s149, %s165
      %p167 = scmp.eq.s32.totalorder %s23, 0
      %p168 = por %p166, %p167
      %p169 = scmp.le.s32.totalorder 1, %s17
      %p170 = scmp.lt.s32.totalorder %s17, 5
      %p171 = pnand %p169, %p170
      %p172 = pneg %p171
      // Predicated region
      $region9: #{tpu_custom_call.1} parent=5 // pred_check
        _
      $region10: #{tpu_custom_call.1} parent=5 // pred_check_branch
        %174 = sbr.rel (%p171) target = $region12
      $region11: #{tpu_custom_call.1} parent=5 // pred_region
        %s175 = ssub.s32 %s17, 1
      $region12: #{tpu_custom_call.1} parent=5 // pred_fallthru
        _
      %p176 = scmp.lt.s32.totalorder %s17, 4
      // Predicated region
      $region13: #{tpu_custom_call.1} parent=5 // pred_check
        %p177 = pneg %p176
      $region14: #{tpu_custom_call.1} parent=5 // pred_check_branch
        %179 = sbr.rel (%p177) target = $region16
      $region15: #{tpu_custom_call.1} parent=5 // pred_region
        // Predicated region
        $region17: #{tpu_custom_call.1} parent=15 // pred_check
          %p180 = pneg %p49
        $region18: #{tpu_custom_call.1} parent=15 // pred_check_branch
          %182 = sbr.rel (%p180) target = $region20
        $region19: #{tpu_custom_call.1} parent=15 // pred_region
          %s183 = smul.u32 2, %s24
          %p184 = scmp.lt.s32.totalorder %s183, 3
          %s185 = scalar_select %p184, %s183, 3
          %s186 = smul.addr %s185, 8
          %s187 = scalar_lea.vmem %s0, %s186
          %s188 = smul.u32 2, %s24
        $region20: #{tpu_custom_call.1} parent=15 // pred_fallthru
          _
        // Predicated region
        $region21: #{tpu_custom_call.1} parent=15 // pred_check
          %p189 = pneg %p75
        $region22: #{tpu_custom_call.1} parent=15 // pred_check_branch
          %191 = sbr.rel (%p189) target = $region24
        $region23: #{tpu_custom_call.1} parent=15 // pred_region
          %s192 = smul.u32 2, %s24
          %p193 = scmp.lt.s32.totalorder %s192, 3
          %s194 = scalar_select %p193, %s192, 3
          %s195 = smul.addr %s194, 8
          %s196 = scalar_lea.vmem %s1, %s195
          %s197 = smul.u32 2, %s24
        $region24: #{tpu_custom_call.1} parent=15 // pred_fallthru
          _
        // Predicated region
        $region25: #{tpu_custom_call.1} parent=15 // pred_check
          %p198 = pneg %p101
        $region26: #{tpu_custom_call.1} parent=15 // pred_check_branch
          %200 = sbr.rel (%p198) target = $region28
        $region27: #{tpu_custom_call.1} parent=15 // pred_region
          %s201 = sand.u32 %s91, 1
          %s202 = scalar_lea.sflag [#allocation6], %s201
          %s203 = sand.u32 %s91, 1
          %s204 = smul.addr %s203, 32
          %s205 = scalar_lea.vmem [#allocation5], %s204
          %s206 = smul.u32 2, %s25
          %s208 = ssub.s32 512, 512
          %209 = vsyncadd %s202, %s208
          %s210 = smul.addr %s206, 64
          %s211 = scalar_lea.hbm %s2, %s210
          %s212 = sshll.u32 %s205, 4
          %s213 = int_to_ptr.vmem [resolvable:$true] %s212
          %218 = dma.hbm_to_vmem [thread:$0]  %s211, 512, %s213, %s202, 256, 128, 8
        $region28: #{tpu_custom_call.1} parent=15 // pred_fallthru
          _
      $region16: #{tpu_custom_call.1} parent=5 // pred_fallthru
        _
      %p219 = scmp.le.s32.totalorder 1, %s17
      %p220 = scmp.lt.s32.totalorder %s17, 5
      %p221 = pnand %p219, %p220
      %p222 = pneg %p221
      // Predicated region
      $region29: #{tpu_custom_call.1} parent=5 // pred_check
        _
      $region30: #{tpu_custom_call.1} parent=5 // pred_check_branch
        %224 = sbr.rel (%p221) target = $region32
      $region31: #{tpu_custom_call.1} parent=5 // pred_region
        %s225 = ssub.s32 %s17, 1
        %s226 = sand.u32 %s94, 1
        %s227 = scalar_lea.sflag [#allocation6], %s226
        %s228 = sand.u32 %s94, 1
        %s229 = smul.addr %s228, 32
        %s230 = scalar_lea.vmem [#allocation5], %s229
        // Predicated region
        $region33: #{tpu_custom_call.1} parent=31 // pred_check
          %p231 = pneg %p107
        $region34: #{tpu_custom_call.1} parent=31 // pred_check_branch
          %233 = sbr.rel (%p231) target = $region36
        $region35: #{tpu_custom_call.1} parent=31 // pred_region
          %234 = dma.done %s227, 512
        $region36: #{tpu_custom_call.1} parent=31 // pred_fallthru
          _
        %s235 = smul.u32 2, %s26
        %p236 = scmp.lt.s32.totalorder %s235, 3
        %s237 = scalar_select %p236, %s235, 3
        %s238 = smul.addr %s237, 8
        %s239 = scalar_lea.vmem %s0, %s238
        %p240 = pneg %p55
        %p241 = pneg %p52
        %s242 = smul.u32 2, %s26
        %p243 = scmp.lt.s32.totalorder %s242, 3
        %s244 = scalar_select %p243, %s242, 3
        %s245 = smul.addr %s244, 8
        %s246 = scalar_lea.vmem %s1, %s245
        %p247 = pneg %p81
        %p248 = pneg %p78
        %s249 = sand.u32 %s94, 1
        %s250 = scalar_lea.sflag [#allocation6], %s249
        %s251 = sand.u32 %s94, 1
        %s252 = smul.addr %s251, 32
        %s253 = scalar_lea.vmem [#allocation5], %s252
        %p254 = pneg %p107
        %p255 = pneg %p104
        %p256 = pneg %p135
        %p257 = pneg %p132
        %s258 = sand.u32 %s122, 1
        %s259 = scalar_lea.sflag [#allocation7], %s258
        %s260 = sand.u32 %s122, 1
        %s261 = smul.addr %s260, 32
        %s262 = scalar_lea.vmem [#allocation8], %s261
        %p263 = pneg %p161
        %p264 = pneg %p158
        %s265 = smul.u32 2, %s26
        %p266 = scmp.lt.s32.totalorder %s265, 3
        %s267 = scalar_select %p266, %s265, 3
        %s268 = smul.addr %s267, 8
        %s269 = scalar_lea.vmem %s4, %s268
        %s270 = smul.u32 2, %s26
        %p271 = scmp.lt.s32.totalorder %s270, 3
        %s272 = scalar_select %p271, %s270, 3
        %s273 = smul.addr %s272, 8
        %s274 = scalar_lea.vmem %s0, %s273
        %s275 = smul.u32 2, %s26
        %s276 = smul.u32 2, %s26
        %p277 = scmp.lt.s32.totalorder %s276, 3
        %s278 = scalar_select %p277, %s276, 3
        %s279 = smul.addr %s278, 8
        %s280 = scalar_lea.vmem %s1, %s279
        %s281 = smul.u32 2, %s26
        %s282 = smul.u32 2, %s27
        %s283 = smul.u32 2, %s26
        %s284 = smul.u32 2, %s27
        %s285 = smul.u32 2, %s26
        %p286 = scmp.lt.s32.totalorder %s285, 3
        %s287 = scalar_select %p286, %s285, 3
        %s288 = smul.addr %s287, 8
        %s289 = scalar_lea.vmem %s4, %s288
        %s290 = smul.u32 2, %s26
        %p292 = scmp.eq.s32.totalorder %s27, 0
        // Predicated region
        $region37: #{tpu_custom_call.1} parent=31 // pred_check
          %p293 = pneg %p292
        $region38: #{tpu_custom_call.1} parent=31 // pred_check_branch
          %295 = sbr.rel (%p293) target = $region40
        $region39: #{tpu_custom_call.1} parent=31 // pred_region
          %vm296 = vcmask 7168
          %297 = vst.msk [vmem:[#allocation2] sm:$0xff] %vm296, -inf
          %298 = vst.msk [vmem:[#allocation2 + $0x8] sm:$0xff] %vm296, -inf
          %299 = vst.msk [vmem:[#allocation3] sm:$0xff] %vm296, 0.0
          %300 = vst.msk [vmem:[#allocation3 + $0x8] sm:$0xff] %vm296, 0.0
          %301 = vst.msk [vmem:[#allocation4] sm:$0xff] %vm296, 0.0
          %302 = vst.msk [vmem:[#allocation4 + $0x8] sm:$0xff] %vm296, 0.0
        $region40: #{tpu_custom_call.1} parent=31 // pred_fallthru
          _
        %v303 = vld [vmem:[%s280] sm:$0xff]
        %v304 = vld [vmem:[%s280 + $0x8] sm:$0xff]
        %v305 = vld [vmem:[%s230] sm:$0xff]
        %v306 = vld [vmem:[%s230 + $0x8] sm:$0xff]
        %v307 = vld [vmem:[%s230 + $0x10] sm:$0xff]
        %v308 = vld [vmem:[%s230 + $0x18] sm:$0xff]
        %v309 = vunpack.c.l.bf16 %v305
        %v310 = vunpack.c.h.bf16 %v305
        %v311 = vunpack.c.l.bf16 %v306
        %v312 = vunpack.c.h.bf16 %v306
        %v313 = vunpack.c.l.bf16 %v307
        %v314 = vunpack.c.h.bf16 %v307
        %v315 = vunpack.c.l.bf16 %v308
        %v316 = vunpack.c.h.bf16 %v308
        %v317 = vmul.f32 %v303, %v303
        %v318 = vmul.f32 %v304, %v304
        %vm319 = vcmask 261120
        %v320 = vsel %vm319, %v317, 0.0
        %321 = vadd.xlane.f32.xlu0 %v320
        %v322 = vpop.xlane.xlu0 %321
        %v323 = vsel %vm319, %v318, 0.0
        %324 = vadd.xlane.f32.xlu0 %v323
        %v325 = vpop.xlane.xlu0 %324
        %v326 = vrsqrt.pop %v322
        %v327 = vrsqrt.pop %v325
        %v328 = vmul.f32 %v303, %v326
        %v329 = vmul.f32 %v304, %v327
        %v330 = vmul.f32 %v309, %v309
        %v331 = vmul.f32 %v310, %v310
        %v332 = vmul.f32 %v311, %v311
        %v333 = vmul.f32 %v312, %v312
        %v334 = vmul.f32 %v313, %v313
        %v335 = vmul.f32 %v314, %v314
        %v336 = vmul.f32 %v315, %v315
        %v337 = vmul.f32 %v316, %v316
        %v338 = vadd.f32 %v330, %v332
        %v339 = vadd.f32 %v338, %v334
        %v340 = vadd.f32 %v339, %v336
        %v341 = vrot.slane %v340, 4
        %v342 = vadd.f32 %v340, %v341
        %v343 = vrot.slane %v342, 2
        %v344 = vadd.f32 %v342, %v343
        %v345 = vrot.slane %v344, 1
        %v346 = vadd.f32 %v344, %v345
        %v347 = vadd.f32 %v331, %v333
        %v348 = vadd.f32 %v347, %v335
        %v349 = vadd.f32 %v348, %v337
        %v350 = vrot.slane %v349, 4
        %v351 = vadd.f32 %v349, %v350
        %v352 = vrot.slane %v351, 2
        %v353 = vadd.f32 %v351, %v352
        %v354 = vrot.slane %v353, 1
        %v355 = vadd.f32 %v353, %v354
        %v356 = vrsqrt.pop %v346
        %v357 = vrsqrt.pop %v355
        %v358 = vmul.f32 %v309, %v356
        %v359 = vmul.f32 %v310, %v357
        %v360 = vmul.f32 %v311, %v356
        %v361 = vmul.f32 %v312, %v357
        %v362 = vmul.f32 %v313, %v356
        %v363 = vmul.f32 %v314, %v357
        %v364 = vmul.f32 %v315, %v356
        %v365 = vmul.f32 %v316, %v357
        %v366 = vpack.c.bf16 %v329, %v328
        %v367 = vpack.c.bf16 %v360, %v358
        %v368 = vpack.c.bf16 %v361, %v359
        %v369 = vpack.c.bf16 %v364, %v362
        %v370 = vpack.c.bf16 %v365, %v363
        %v372 = vsel %vm319, %v366, 0
        %374 = vmatprep.subr.bf16.mxu0 %v368
        %375 = vmatpush1.bf16.msra.mxu0 %v367
        %376 = vmatprep.subr.bf16.mxu0 %v370
        %377 = vmatpush1.bf16.msra.mxu0 %v369
        %378 = vmatprep.subr.bf16.mxu0 0
        %379 = vmatpush1.bf16.msra.mxu0 0
        %380 = vmatprep.subr.bf16.mxu0 0
        %381 = vmatpush1.bf16.msra.mxu0 0
        %382 = vmatprep.subr.bf16.mxu0 0
        %383 = vmatpush1.bf16.msra.mxu0 0
        %384 = vmatprep.subr.bf16.mxu0 0
        %385 = vmatpush1.bf16.msra.mxu0 0
        %386 = vmatprep.subr.bf16.mxu0 0
        %387 = vmatpush1.bf16.msra.mxu0 0
        %388 = vmatprep.subr.bf16.mxu0 0
        %389 = vmatpush1.bf16.msra.mxu0 0
        %390 = vmatprep.subr.bf16.mxu0 0
        %391 = vmatpush1.bf16.msra.mxu0 0
        %392 = vmatprep.subr.bf16.mxu0 0
        %393 = vmatpush1.bf16.msra.mxu0 0
        %394 = vmatprep.subr.bf16.mxu0 0
        %395 = vmatpush1.bf16.msra.mxu0 0
        %396 = vmatprep.subr.bf16.mxu0 0
        %397 = vmatpush1.bf16.msra.mxu0 0
        %398 = vmatprep.subr.bf16.mxu0 0
        %399 = vmatpush1.bf16.msra.mxu0 0
        %400 = vmatprep.subr.bf16.mxu0 0
        %401 = vmatpush1.bf16.msra.mxu0 0
        %402 = vmatprep.subr.bf16.mxu0 0
        %403 = vmatpush1.bf16.msra.mxu0 0
        %404 = vmatprep.subr.bf16.mxu0 0
        %405 = vmatpush1.bf16.msra.mxu0 0
        %406 = vmatprep.mubr.bf16.mxu0 0
        %407 = vmatmul.mubr.bf16.gmra.mrb[0].mxu0 %v372
        %v408 = vpop.f32.mrb[0].mxu0
        %v409 = vadd.f32 0.0, %v408
        %v410 = vpop.f32.mrb[0].mxu0
        %v411 = vadd.f32 0.0, %v410
        %v412 = vpop.f32.mrb[0].mxu0
        %v413 = vadd.f32 0.0, %v412
        %v414 = vpop.f32.mrb[0].mxu0
        %v415 = vadd.f32 0.0, %v414
        %416 = vdwg.mxu0
        %v417 = vmax.f32 %v409, -1.0
        %v418 = vmax.f32 %v411, -1.0
        %v419 = vmax.f32 %v413, -1.0
        %v420 = vmax.f32 %v415, -1.0
        %v421 = vmin.f32 %v417, 1.0
        %v422 = vmin.f32 %v418, 1.0
        %v423 = vmin.f32 %v419, 1.0
        %v424 = vmin.f32 %v420, 1.0
        %v425 = vld [vmem:[%s274] sm:$0xff]
        %v426 = vld [vmem:[%s274 + $0x8] sm:$0xff]
        %s427 = smul.u32 %s27, 256
        %v428 = vlaneseq
        %v429 = vand.u32 %v428, 127
        %v430 = vadd.s32 %v429, 128
        %v431 = vstv %s427
        %v432 = vadd.s32 %v431, %v429
        %v433 = vadd.s32 %v431, %v430
        %434 = vset.pattern.permute.xlu0 0
        %435 = vperm.xlu0 %434, %v425
        %v436 = vpop.permute.xlu0 %435
        %437 = vset.pattern.permute.xlu0 0
        %438 = vperm.xlu0 %437, %v426
        %v439 = vpop.permute.xlu0 %438
        %vm440 = vcmp.eq.s32.totalorder %v432, %v436
        %vm441 = vcmp.eq.s32.totalorder %v433, %v436
        %vm442 = vcmp.eq.s32.totalorder %v432, %v439
        %vm443 = vcmp.eq.s32.totalorder %v433, %v439
        %vm444 = vcmp.ge.s32.totalorder %v425, %v431
        %vm445 = vcmp.ge.s32.totalorder %v426, %v431
        %s446 = sadd.s32 %s427, 256
        %v447 = vstv %s446
        %vm448 = vcmp.lt.s32.totalorder %v425, %v447
        %vm449 = vcmp.lt.s32.totalorder %v426, %v447
        %vm450 = vmand %vm444, %vm448
        %vm451 = vmand %vm445, %vm449
        %v452 = vsel %vm440, %v421, 0.0
        %v453 = vsel %vm441, %v422, 0.0
        %v454 = vsel %vm442, %v423, 0.0
        %v455 = vsel %vm443, %v424, 0.0
        %v456 = vadd.f32 %v452, %v453
        %457 = vadd.xlane.f32.xlu0 %v456
        %v458 = vpop.xlane.xlu0 %457
        %v459 = vadd.f32 %v454, %v455
        %460 = vadd.xlane.f32.xlu0 %v459
        %v461 = vpop.xlane.xlu0 %460
        %v462 = vmul.f32 %v458, %v458
        %v463 = vmul.f32 %v461, %v461
        %v464 = vsub.f32 1.0, %v462
        %v465 = vsub.f32 1.0, %v463
        %v466 = vmax.f32 %v464, 0.0
        %v467 = vmax.f32 %v465, 0.0
        %v468 = vrsqrt.pop %v466
        %v469 = vmul.f32 %v466, %v468
        %vm470 = vcmp.eq.f32.partialorder %v466, inf
        %v471 = vsel %vm470, %v466, %v469
        %vm472 = vcmp.eq.f32.partialorder %v466, 0.0
        %v473 = vand.u32 %v466, 2147483648
        %v474 = vsel %vm472, %v473, %v471
        %v475 = vrsqrt.pop %v467
        %v476 = vmul.f32 %v467, %v475
        %vm477 = vcmp.eq.f32.partialorder %v467, inf
        %v478 = vsel %vm477, %v467, %v476
        %vm479 = vcmp.eq.f32.partialorder %v467, 0.0
        %v480 = vand.u32 %v467, 2147483648
        %v481 = vsel %vm479, %v480, %v478
        %v482 = vmul.f32 %v458, 0.87758255
        %v483 = vmul.f32 %v461, 0.87758255
        %v484 = vmul.f32 %v474, 0.47942555
        %v485 = vmul.f32 %v481, 0.47942555
        %v486 = vsub.f32 %v482, %v484
        %v487 = vsub.f32 %v483, %v485
        %vm488 = vcmp.gt.f32.partialorder %v458, -0.87758255
        %vm489 = vcmp.gt.f32.partialorder %v461, -0.87758255
        %v490 = vsub.f32 %v458, 0.23971277
        %v491 = vsub.f32 %v461, 0.23971277
        %v492 = vsel %vm488, %v486, %v490
        %v493 = vsel %vm489, %v487, %v491
        %v494 = vsel %vm440, %v492, %v421
        %v495 = vsel %vm441, %v492, %v422
        %v496 = vsel %vm442, %v493, %v423
        %v497 = vsel %vm443, %v493, %v424
        %v498 = vmul.f32 %v494, 64.0
        %v499 = vmul.f32 %v495, 64.0
        %v500 = vmul.f32 %v496, 64.0
        %v501 = vmul.f32 %v497, 64.0
        %502 = vst [vmem:[%s262] sm:$0xff] %v498
        %503 = vst [vmem:[%s262 + $0x8] sm:$0xff] %v499
        %504 = vst [vmem:[%s262 + $0x10] sm:$0xff] %v500
        %505 = vst [vmem:[%s262 + $0x18] sm:$0xff] %v501
        %v506 = vmax.f32 %v498, %v499
        %507 = vmax.xlane.f32.xlu0 %v506
        %v508 = vpop.xlane.xlu0 %507
        %v509 = vmax.f32 %v500, %v501
        %510 = vmax.xlane.f32.xlu0 %v509
        %v511 = vpop.xlane.xlu0 %510
        %v512 = vld [vmem:[#allocation2] sm:$0xff]
        %v513 = vld [vmem:[#allocation2 + $0x8] sm:$0xff]
        %v514 = vmax.f32 %v512, %v508
        %v515 = vmax.f32 %v513, %v511
        %v516 = vld [vmem:[#allocation3] sm:$0xff]
        %v517 = vld [vmem:[#allocation3 + $0x8] sm:$0xff]
        %v518 = vsub.f32 %v512, %v514
        %v519 = vsub.f32 %v513, %v515
        %v520 = vmul.f32 %v518, 1.442695
        %v521 = vpow.pop %v520
        %v522 = vmul.f32 %v519, 1.442695
        %v523 = vpow.pop %v522
        %v524 = vmul.f32 %v516, %v521
        %v525 = vmul.f32 %v517, %v523
        %527 = vset.pattern.permute.xlu0 0
        %528 = vperm.xlu0 %527, %v514
        %v529 = vpop.permute.xlu0 %528
        %532 = vset.pattern.permute.xlu0 0
        %533 = vperm.xlu0 %532, %v515
        %v534 = vpop.permute.xlu0 %533
        %v536 = vsub.f32 %v498, %v529
        %v537 = vsub.f32 %v499, %v529
        %v538 = vsub.f32 %v500, %v534
        %v539 = vsub.f32 %v501, %v534
        %v540 = vmul.f32 %v536, 1.442695
        %v541 = vpow.pop %v540
        %v542 = vmul.f32 %v537, 1.442695
        %v543 = vpow.pop %v542
        %v544 = vmul.f32 %v538, 1.442695
        %v545 = vpow.pop %v544
        %v546 = vmul.f32 %v539, 1.442695
        %v547 = vpow.pop %v546
        %v548 = vadd.f32 %v541, %v543
        %549 = vadd.xlane.f32.xlu0 %v548
        %v550 = vpop.xlane.xlu0 %549
        %v551 = vadd.f32 %v545, %v547
        %552 = vadd.xlane.f32.xlu0 %v551
        %v553 = vpop.xlane.xlu0 %552
        %v554 = vadd.f32 %v524, %v550
        %v555 = vadd.f32 %v525, %v553
        %vm556 = vcmask 7168
        %557 = vst.msk [vmem:[#allocation3] sm:$0xff] %vm556, %v554
        %558 = vst.msk [vmem:[#allocation3 + $0x8] sm:$0xff] %vm556, %v555
        %559 = vst.msk [vmem:[#allocation2] sm:$0xff] %vm556, %v514
        %560 = vst.msk [vmem:[#allocation2 + $0x8] sm:$0xff] %vm556, %v515
        %v561 = vld [vmem:[#allocation4] sm:$0xff]
        %v562 = vld [vmem:[#allocation4 + $0x8] sm:$0xff]
        %v563 = vmul.f32 %v492, 64.0
        %v564 = vmul.f32 %v493, 64.0
        %v565 = vsel %vm450, %v563, 0.0
        %v566 = vsel %vm451, %v564, 0.0
        %v567 = vadd.f32 %v561, %v565
        %v568 = vadd.f32 %v562, %v566
        %569 = vst.msk [vmem:[#allocation4] sm:$0xff] %vm556, %v567
        %570 = vst.msk [vmem:[#allocation4 + $0x8] sm:$0xff] %vm556, %v568
        %p571 = scmp.eq.s32.totalorder %s27, 1
        // Predicated region
        $region41: #{tpu_custom_call.1} parent=31 // pred_check
          %p572 = pneg %p571
        $region42: #{tpu_custom_call.1} parent=31 // pred_check_branch
          %574 = sbr.rel (%p572) target = $region44
        $region43: #{tpu_custom_call.1} parent=31 // pred_region
          %v575 = vld [vmem:[#allocation2] sm:$0xff]
          %v576 = vld [vmem:[#allocation2 + $0x8] sm:$0xff]
          %v577 = vld [vmem:[#allocation3] sm:$0xff]
          %v578 = vld [vmem:[#allocation3 + $0x8] sm:$0xff]
          %v579 = vlog2.pop %v577
          %v580 = vmul.f32 %v579, 0.6931472
          %v581 = vlog2.pop %v578
          %v582 = vmul.f32 %v581, 0.6931472
          %v583 = vadd.f32 %v575, %v580
          %v584 = vadd.f32 %v576, %v582
          %v585 = vld [vmem:[#allocation4] sm:$0xff]
          %v586 = vld [vmem:[#allocation4 + $0x8] sm:$0xff]
          %v587 = vsub.f32 %v583, %v585
          %v588 = vsub.f32 %v584, %v586
          %589 = vst.msk [vmem:[%s289] sm:$0xff] %vm556, %v587
          %590 = vst.msk [vmem:[%s289 + $0x8] sm:$0xff] %vm556, %v588
        $region44: #{tpu_custom_call.1} parent=31 // pred_fallthru
          _
        %s591 = sand.u32 %s122, 1
        %s592 = scalar_lea.sflag [#allocation7], %s591
        %s593 = sand.u32 %s122, 1
        %s594 = smul.addr %s593, 32
        %s595 = scalar_lea.vmem [#allocation8], %s594
        %s596 = smul.u32 2, %s26
        %p597 = scmp.lt.s32.totalorder %s596, 3
        %s598 = scalar_select %p597, %s596, 3
        %s599 = smul.addr %s598, 8
        %s600 = scalar_lea.vmem %s4, %s599
        // Predicated region
        $region45: #{tpu_custom_call.1} parent=31 // pred_check
          %p601 = pneg %p132
        $region46: #{tpu_custom_call.1} parent=31 // pred_check_branch
          %603 = sbr.rel (%p601) target = $region48
        $region47: #{tpu_custom_call.1} parent=31 // pred_region
          %s604 = smul.u32 2, %s26
          %s605 = smul.u32 2, %s27
          %s607 = ssub.s32 512, 512
          %608 = vsyncadd %s592, %s607
          %s609 = smul.addr %s604, 4
          %s610 = sadd.s32 %s605, %s609
          %s611 = smul.addr %s610, 128
          %s612 = scalar_lea.hbm %s3, %s611
          %s613 = sshll.u32 %s595, 4
          %s614 = int_to_ptr.vmem [resolvable:$true] %s613
          %619 = dma.vmem_to_hbm [thread:$0]  %s614, 512, %s612, %s592, 256, 512, 16
        $region48: #{tpu_custom_call.1} parent=31 // pred_fallthru
          _
        // Predicated region
        $region49: #{tpu_custom_call.1} parent=31 // pred_check
          %p620 = pneg %p158
        $region50: #{tpu_custom_call.1} parent=31 // pred_check_branch
          %622 = sbr.rel (%p620) target = $region52
        $region51: #{tpu_custom_call.1} parent=31 // pred_region
          %s623 = smul.u32 2, %s26
        $region52: #{tpu_custom_call.1} parent=31 // pred_fallthru
          _
      $region32: #{tpu_custom_call.1} parent=5 // pred_fallthru
        _
      %p624 = scmp.le.s32.totalorder 2, %s17
      // Predicated region
      $region53: #{tpu_custom_call.1} parent=5 // pred_check
        %p625 = pneg %p624
      $region54: #{tpu_custom_call.1} parent=5 // pred_check_branch
        %627 = sbr.rel (%p625) target = $region56
      $region55: #{tpu_custom_call.1} parent=5 // pred_region
        %s628 = ssub.s32 %s17, 2
        // Predicated region
        $region57: #{tpu_custom_call.1} parent=55 // pred_check
          %p629 = pneg %p138
        $region58: #{tpu_custom_call.1} parent=55 // pred_check_branch
          %631 = sbr.rel (%p629) target = $region60
        $region59: #{tpu_custom_call.1} parent=55 // pred_region
          %s632 = sand.u32 %s123, 1
          %s633 = scalar_lea.sflag [#allocation7], %s632
          %s634 = sand.u32 %s123, 1
          %s635 = smul.addr %s634, 32
          %s636 = scalar_lea.vmem [#allocation8], %s635
          %637 = dma.done %s633, 512
        $region60: #{tpu_custom_call.1} parent=55 // pred_fallthru
          _
        // Predicated region
        $region61: #{tpu_custom_call.1} parent=55 // pred_check
          %p638 = pneg %p164
        $region62: #{tpu_custom_call.1} parent=55 // pred_check_branch
          %640 = sbr.rel (%p638) target = $region64
        $region63: #{tpu_custom_call.1} parent=55 // pred_region
          %s641 = smul.u32 2, %s28
          %p642 = scmp.lt.s32.totalorder %s641, 3
          %s643 = scalar_select %p642, %s641, 3
          %s644 = smul.addr %s643, 8
          %s645 = scalar_lea.vmem %s4, %s644
        $region64: #{tpu_custom_call.1} parent=55 // pred_fallthru
          _
      $region56: #{tpu_custom_call.1} parent=5 // pred_fallthru
        _
    $region6: #{tpu_custom_call.1} parent=1 // loop_footer
      %s21 = sadd.s32 1, %s17
    $region7: #{tpu_custom_call.1} parent=1 // loop_footer_branch
      %16 = sbr.rel target = $region3
    $region8: #{tpu_custom_call.1} parent=1 // loop_exit
      _
    %646 = vsyncpa [#allocation6], 1
    %s647 = scalar_lea.sflag [#allocation6], 1
    %648 = vsyncpa %s647, 1
    %649 = vsyncpa [#allocation7], 1
    %s650 = scalar_lea.sflag [#allocation7], 1
    %651 = vsyncpa %s650, 1

</llo_original>
